<compile_context>
chip_gen: v7x
topology: tpu7x:2x2x1
jax: 0.10.0
libtpu: 0.0.40
codegen_flags: <defaults>
</compile_context>

<pallas_src>
import jax
import jax.numpy as jnp
from jax.experimental import pallas as pl
from jax.experimental.pallas import tpu as pltpu


def lambda_layer(x, planes):
    """Pallas TPU implementation of the LambdaLayer shortcut lambda.

    x: (B, C, H, W).  Output: (B, C + 2*(planes//4), ceil(H/2), ceil(W/2)).
    """
    B, C, H, W = x.shape
    pad = planes // 4
    c_out = C + 2 * pad
    Ho = (H + 1) // 2   # matches PyTorch x[:, :, ::2, ::2] for odd sizes too
    Wo = (W + 1) // 2

    def kernel(x_ref, o_ref):
        # x_ref: (C, H, W)   o_ref: (c_out, Ho, Wo)   — one batch element per step.

        # Zero the whole output block once (covers both channel-padding bands).
        o_ref[...] = jnp.zeros_like(o_ref)

        # Stride-2 row subsample via a sublane-strided load (no sh matmul,
        # no (Ho,H) operand, no intermediate f32 temp in HBM).
        t = x_ref[:, pl.ds(0, Ho, stride=2), :]                # (C, Ho, W)

        # Stride-2 column (lane) subsample via an exact 0/1 selection matmul.
        # Selection matrix built in-register: sw[i, j] = (i == 2*j).
        r = jax.lax.broadcasted_iota(jnp.int32, (W, Wo), 0)
        c = jax.lax.broadcasted_iota(jnp.int32, (W, Wo), 1)
        sw = (r == 2 * c).astype(t.dtype)                       # (W, Wo)
        y = jnp.dot(t.reshape(C * Ho, W), sw,
                    preferred_element_type=jnp.float32)         # (C*Ho, Wo)

        # Single store of the data channels into the middle of the block.
        o_ref[pl.ds(pad, C)] = y.reshape(C, Ho, Wo).astype(o_ref.dtype)

    itemsize = jnp.dtype(x.dtype).itemsize
    cost = pl.CostEstimate(
        flops=2 * B * C * Ho * W * Wo,        # the tiny selection matmul
        transcendentals=0,
        bytes_accessed=x.size * itemsize + B * c_out * Ho * Wo * itemsize,
    )

    return pl.pallas_call(
        kernel,
        out_shape=jax.ShapeDtypeStruct((B, c_out, Ho, Wo), x.dtype),
        grid=(B,),
        in_specs=[pl.BlockSpec((None, C, H, W), lambda b: (b, 0, 0, 0))],
        out_specs=pl.BlockSpec((None, c_out, Ho, Wo), lambda b: (b, 0, 0, 0)),
        compiler_params=pltpu.CompilerParams(
            dimension_semantics=("parallel",)),   # batch axis -> both TCs on v7x
        cost_estimate=cost,
    )(x)


if __name__ == "__main__":
    key = jax.random.PRNGKey(0)
    B, C, H, W = 2, 4, 16, 16
    planes = 8                       # shortcut pads planes//4 = 2 channels each side
    x = jax.random.normal(key, (B, C, H, W), dtype=jnp.float32)

    y = jax.block_until_ready(lambda_layer(x, planes))

    # Pure-JAX reference of the wrapped lambda.
    pad = planes // 4
    ref = jnp.pad(x[:, :, ::2, ::2], ((0, 0), (pad, pad), (0, 0), (0, 0)))
    assert y.shape == ref.shape, (y.shape, ref.shape)
    assert jnp.allclose(y, ref), "mismatch vs reference"
    print("KERNEL_OK")
</pallas_src>

<mosaic_0001>
module attributes {stable_mosaic.version = 11 : i64} {
  func.func @kernel(%arg0: i32, %arg1: memref<1x4x16x16xf32, #tpu.memory_space<vmem>>, %arg2: memref<1x8x8x8xf32, #tpu.memory_space<vmem>>) attributes {dimension_semantics = [#tpu.dimension_semantics<parallel>], iteration_bounds = array<i64: 2>, scalar_prefetch = 0 : i64, scratch_operands = 0 : i64, tpu.core_type = #tpu.core_type<tc>, window_params = [{transform_indices = @transform_0, window_bounds = array<i64: 1, 4, 16, 16>}, {transform_indices = @transform_1, window_bounds = array<i64: 1, 8, 8, 8>}]} {
    %cst = arith.constant 0.000000e+00 : f32
    %0 = vector.broadcast %cst : f32 to vector<8x8x8xf32>
    %c0 = arith.constant 0 : index
    %c0_0 = arith.constant 0 : index
    %c0_1 = arith.constant 0 : index
    %c0_2 = arith.constant 0 : index
    %1 = vector.load %arg2[%c0, %c0_0, %c0_1, %c0_2] : memref<1x8x8x8xf32, #tpu.memory_space<vmem>>, vector<1x8x8x8xf32>
    %2 = vector.shape_cast %1 : vector<1x8x8x8xf32> to vector<8x8x8xf32>
    %3 = vector.shape_cast %0 : vector<8x8x8xf32> to vector<1x8x8x8xf32>
    tpu.vector_store %arg2[%c0, %c0_0, %c0_1, %c0_2], %3 {strides = array<i32>} : memref<1x8x8x8xf32, #tpu.memory_space<vmem>>, vector<1x8x8x8xf32>,
    %c0_3 = arith.constant 0 : index
    %c0_4 = arith.constant 0 : index
    %c0_5 = arith.constant 0 : index
    %c0_6 = arith.constant 0 : index
    %4 = tpu.strided_load %arg1[%c0_3, %c0_4, %c0_5, %c0_6] {strides = array<i32: 1, 1, 2, 1>} : memref<1x4x16x16xf32, #tpu.memory_space<vmem>>, vector<1x4x8x16xf32>
    %5 = vector.shape_cast %4 : vector<1x4x8x16xf32> to vector<4x8x16xf32>
    %6 = tpu.iota {dimensions = array<i32: 0>} : vector<16x8xi32>
    %7 = tpu.iota {dimensions = array<i32: 1>} : vector<16x8xi32>
    %c2_i32 = arith.constant 2 : i32
    %8 = vector.broadcast %c2_i32 : i32 to vector<16x8xi32>
    %9 = arith.muli %8, %7 : vector<16x8xi32>
    %10 = arith.cmpi eq, %6, %9 : vector<16x8xi32>
    %11 = arith.extui %10 : vector<16x8xi1> to vector<16x8xi32>
    %12 = arith.sitofp %11 : vector<16x8xi32> to vector<16x8xf32>
    %13 = vector.shape_cast %5 : vector<4x8x16xf32> to vector<32x16xf32>
    %cst_7 = arith.constant dense<0.000000e+00> : vector<32x8xf32>
    %14 = tpu.matmul %13, %12, %cst_7 {dimension_numbers = #tpu.dot_dimension_numbers<[1], [0], [0], [1], [0, 0, 1, 1], [], []>} : vector<32x16xf32>, vector<16x8xf32>, vector<32x8xf32> -> vector<32x8xf32>
    %15 = vector.shape_cast %14 : vector<32x8xf32> to vector<4x8x8xf32>
    %c0_8 = arith.constant 0 : index
    %c2 = arith.constant 2 : index
    %c0_9 = arith.constant 0 : index
    %c0_10 = arith.constant 0 : index
    %16 = vector.load %arg2[%c0_8, %c2, %c0_9, %c0_10] : memref<1x8x8x8xf32, #tpu.memory_space<vmem>>, vector<1x4x8x8xf32>
    %17 = vector.shape_cast %16 : vector<1x4x8x8xf32> to vector<4x8x8xf32>
    %18 = vector.shape_cast %15 : vector<4x8x8xf32> to vector<1x4x8x8xf32>
    tpu.vector_store %arg2[%c0_8, %c2, %c0_9, %c0_10], %18 {strides = array<i32>} : memref<1x8x8x8xf32, #tpu.memory_space<vmem>>, vector<1x4x8x8xf32>,
    return
  }
  func.func @transform_0(%arg0: i32) -> (i32, i32, i32, i32) {
    %c0_i32 = arith.constant 0 : i32
    %c0_i32_0 = arith.constant 0 : i32
    %c0_i32_1 = arith.constant 0 : i32
    %c0_i32_2 = arith.constant 0 : i32
    return %arg0, %c0_i32, %c0_i32_0, %c0_i32_1 : i32, i32, i32, i32
  }
  func.func @transform_1(%arg0: i32) -> (i32, i32, i32, i32) {
    %c0_i32 = arith.constant 0 : i32
    %c0_i32_0 = arith.constant 0 : i32
    %c0_i32_1 = arith.constant 0 : i32
    %c0_i32_2 = arith.constant 0 : i32
    return %arg0, %c0_i32, %c0_i32_0, %c0_i32_1 : i32, i32, i32, i32
  }
}

</mosaic_0001>

<llo_original>
// kernel: tpu_custom_call.1
$region0: #{tpu_custom_call.1}
  #allocation0 [shape = 'u32[]', space=smem, size = 0x4, offset = 0x4, fixed_abs, tag = 'smem constant byte address 0x4 - core index']
  #allocation1 [shape = 'u32[144,128]{1,0:T(1,128)}', space=vmem, size = 0x12000, scoped, tag = 'internal scratch']
  %s0 = inlined_call_operand.hbm [shape: f32[2,4,16,16], index: 0, kind: input, shape index: {}]
  %s1 = inlined_call_operand.hbm [shape: f32[2,8,8,8], index: 1, kind: output, shape index: {}]
  %s2 = sld [smem:[#allocation0]]
  $region41: #{tpu_custom_call.1} parent=0
    _
  %s4 = ssub.s32 1, %s2
  %s5 = scalar_select 0, %s4, %s2
  $region1: #{tpu_custom_call.1} parent=0
    #allocation2 [shape = 'u8[65536]{0}', space=vmem, size = 0x10000, scoped, tag = 'input window, operand 0']
    #allocation3 [shape = 's32[2]{0}', space=sflag, size = 0x8, scoped, tag = 'scoped memory for tpu_custom_call.1']
    #allocation4 [shape = 's32[2]{0}', space=sflag, size = 0x8, scoped, tag = 'scoped memory for tpu_custom_call.1']
    #allocation5 [shape = 'u8[65536]{0}', space=vmem, size = 0x10000, scoped, tag = 'output window, operand 0']
    %6 = vsyncpa [#allocation3], 0
    %s7 = scalar_lea.sflag [#allocation3], 1
    %8 = vsyncpa %s7, 0
    %9 = vsyncpa [#allocation4], 0
    %s10 = scalar_lea.sflag [#allocation4], 1
    %11 = vsyncpa %s10, 0
    loop: start=0, step=1, limit=4
    $region2: #{tpu_custom_call.1} parent=1 // loop_pre_header
      _
    $region3: #{tpu_custom_call.1} parent=1 // loop_header
      %s13 = sphi 0, %s17
      %p14 = scmp.ge.s32.totalorder %s13, 4
      %s23 = sphi 0, %s25
      %s26 = sphi 0, %s23
      %s27 = sphi 0, %s26
      %s43 = sphi 0, %s27
      %s49 = sphi 0, %s51
      %s52 = sphi 0, %s49
      %s53 = sphi 0, %s52
      %s69 = sphi 0, %s53
    $region4: #{tpu_custom_call.1} parent=1 // loop_header_branch
      %16 = sbr.rel (%p14) target = $region8
    $region5: #{tpu_custom_call.1} parent=1 // loop_body
      %s18 = ssub.s32 %s13, 1
      %s19 = ssub.s32 %s13, 2
      %s20 = sadd.s32 %s13, 1
      %s21 = ssub.s32 %s13, %s20
      %p22 = scmp.eq.s32.totalorder %s21, 0
      %s24 = sadd.s32 %s23, 1
      %s25 = scalar_select %p22, %s23, %s24
      %p28 = pneg %p22
      %p29 = scmp.eq.s32.totalorder %s13, 1
      %p30 = por %p28, %p29
      %p31 = scmp.ne.s32.totalorder %s23, %s26
      %p32 = scmp.eq.s32.totalorder %s13, 0
      %p33 = por %p31, %p32
      %p34 = scmp.ne.s32.totalorder %s23, %s26
      %p35 = scmp.eq.s32.totalorder %s18, 1
      %p36 = por %p34, %p35
      %p37 = scmp.ne.s32.totalorder %s26, %s27
      %p38 = scmp.eq.s32.totalorder %s18, 0
      %p39 = por %p37, %p38
      %p40 = scmp.ne.s32.totalorder %s26, %s27
      %p41 = scmp.eq.s32.totalorder %s19, 1
      %p42 = por %p40, %p41
      %p44 = scmp.ne.s32.totalorder %s27, %s43
      %p45 = scmp.eq.s32.totalorder %s19, 0
      %p46 = por %p44, %p45
      %s47 = ssub.s32 %s13, %s20
      %p48 = scmp.eq.s32.totalorder %s47, 0
      %s50 = sadd.s32 %s49, 1
      %s51 = scalar_select %p48, %s49, %s50
      %p54 = pneg %p48
      %p55 = scmp.eq.s32.totalorder %s13, 1
      %p56 = por %p54, %p55
      %p57 = scmp.ne.s32.totalorder %s49, %s52
      %p58 = scmp.eq.s32.totalorder %s13, 0
      %p59 = por %p57, %p58
      %p60 = scmp.ne.s32.totalorder %s49, %s52
      %p61 = scmp.eq.s32.totalorder %s18, 1
      %p62 = por %p60, %p61
      %p63 = scmp.ne.s32.totalorder %s52, %s53
      %p64 = scmp.eq.s32.totalorder %s18, 0
      %p65 = por %p63, %p64
      %p66 = scmp.ne.s32.totalorder %s52, %s53
      %p67 = scmp.eq.s32.totalorder %s19, 1
      %p68 = por %p66, %p67
      %p70 = scmp.ne.s32.totalorder %s53, %s69
      %p71 = scmp.eq.s32.totalorder %s19, 0
      %p72 = por %p70, %p71
      %p73 = scmp.le.s32.totalorder 1, %s13
      %p74 = scmp.lt.s32.totalorder %s13, 3
      %p75 = pnand %p73, %p74
      %p76 = pneg %p75
      // Predicated region
      $region9: #{tpu_custom_call.1} parent=5 // pred_check
        _
      $region10: #{tpu_custom_call.1} parent=5 // pred_check_branch
        %78 = sbr.rel (%p75) target = $region12
      $region11: #{tpu_custom_call.1} parent=5 // pred_region
        %s79 = ssub.s32 %s13, 1
      $region12: #{tpu_custom_call.1} parent=5 // pred_fallthru
        _
      %p80 = scmp.lt.s32.totalorder %s13, 2
      // Predicated region
      $region13: #{tpu_custom_call.1} parent=5 // pred_check
        %p81 = pneg %p80
      $region14: #{tpu_custom_call.1} parent=5 // pred_check_branch
        %83 = sbr.rel (%p81) target = $region16
      $region15: #{tpu_custom_call.1} parent=5 // pred_region
        // Predicated region
        $region17: #{tpu_custom_call.1} parent=15 // pred_check
          %p84 = pneg %p33
        $region18: #{tpu_custom_call.1} parent=15 // pred_check_branch
          %86 = sbr.rel (%p84) target = $region20
        $region19: #{tpu_custom_call.1} parent=15 // pred_region
          %s87 = sand.u32 %s23, 1
          %s88 = scalar_lea.sflag [#allocation3], %s87
          %s89 = sand.u32 %s23, 1
          %s90 = smul.addr %s89, 64
          %s91 = scalar_lea.vmem [#allocation2], %s90
          %s93 = ssub.s32 1024, 1024
          %94 = vsyncadd %s88, %s93
          %s95 = smul.addr %s13, 8
          %s96 = smul.addr %s95, 128
          %s97 = scalar_lea.hbm %s0, %s96
          %s98 = sshll.u32 %s91, 4
          %s99 = int_to_ptr.vmem [resolvable:$true] %s98
          %104 = dma.hbm_to_vmem [thread:$0]  %s97, 1024, %s99, %s88, 128, 128, 8
        $region20: #{tpu_custom_call.1} parent=15 // pred_fallthru
          _
      $region16: #{tpu_custom_call.1} parent=5 // pred_fallthru
        _
      %p105 = scmp.le.s32.totalorder 1, %s13
      %p106 = scmp.lt.s32.totalorder %s13, 3
      %p107 = pnand %p105, %p106
      %p108 = pneg %p107
      // Predicated region
      $region21: #{tpu_custom_call.1} parent=5 // pred_check
        _
      $region22: #{tpu_custom_call.1} parent=5 // pred_check_branch
        %110 = sbr.rel (%p107) target = $region24
      $region23: #{tpu_custom_call.1} parent=5 // pred_region
        %s111 = ssub.s32 %s13, 1
        %s112 = sand.u32 %s26, 1
        %s113 = scalar_lea.sflag [#allocation3], %s112
        %s114 = sand.u32 %s26, 1
        %s115 = smul.addr %s114, 64
        %s116 = scalar_lea.vmem [#allocation2], %s115
        // Predicated region
        $region25: #{tpu_custom_call.1} parent=23 // pred_check
          %p117 = pneg %p39
        $region26: #{tpu_custom_call.1} parent=23 // pred_check_branch
          %119 = sbr.rel (%p117) target = $region28
        $region27: #{tpu_custom_call.1} parent=23 // pred_region
          %120 = dma.done %s113, 1024
        $region28: #{tpu_custom_call.1} parent=23 // pred_fallthru
          _
        %s121 = sand.u32 %s26, 1
        %s122 = scalar_lea.sflag [#allocation3], %s121
        %s123 = sand.u32 %s26, 1
        %s124 = smul.addr %s123, 64
        %s125 = scalar_lea.vmem [#allocation2], %s124
        %p126 = pneg %p39
        %p127 = pneg %p36
        %p128 = pneg %p65
        %p129 = pneg %p62
        %s130 = sand.u32 %s52, 1
        %s131 = scalar_lea.sflag [#allocation4], %s130
        %s132 = sand.u32 %s52, 1
        %s133 = smul.addr %s132, 64
        %s134 = scalar_lea.vmem [#allocation5], %s133
        %vm135 = vcmask 64512
        %136 = vst.msk [vmem:[%s134] sm:$0xff] %vm135, 0.0
        %137 = vst.msk [vmem:[%s134 + $0x8] sm:$0xff] %vm135, 0.0
        %138 = vst.msk [vmem:[%s134 + $0x10] sm:$0xff] %vm135, 0.0
        %139 = vst.msk [vmem:[%s134 + $0x18] sm:$0xff] %vm135, 0.0
        %140 = vst.msk [vmem:[%s134 + $0x20] sm:$0xff] %vm135, 0.0
        %141 = vst.msk [vmem:[%s134 + $0x28] sm:$0xff] %vm135, 0.0
        %142 = vst.msk [vmem:[%s134 + $0x30] sm:$0xff] %vm135, 0.0
        %143 = vst.msk [vmem:[%s134 + $0x38] sm:$0xff] %vm135, 0.0
        %v144 = vld [vmem:[%s116] ss:$2 sm:$0xff]
        %s145 = scalar_lea.vmem %s116, 16 [#allocation2]
        %v146 = vld [vmem:[%s145] ss:$2 sm:$0xff]
        %s147 = scalar_lea.vmem %s116, 32 [#allocation2]
        %v148 = vld [vmem:[%s147] ss:$2 sm:$0xff]
        %s149 = scalar_lea.vmem %s116, 48 [#allocation2]
        %v150 = vld [vmem:[%s149] ss:$2 sm:$0xff]
        %v151 = vlaneseq
        %v152 = vshrl.u32 %v151, 7
        %v153 = vadd.s32 %v152, 8
        %v154 = vlaneseq
        %v155 = vand.u32 %v154, 127
        %v156 = vmul.u32 %v155, 2
        %vm157 = vcmp.eq.s32.totalorder %v152, %v156
        %vm158 = vcmp.eq.s32.totalorder %v153, %v156
        %v159 = vsel %vm157, 1, 0
        %v160 = vsel %vm158, 1, 0
        %v161 = vcvt.s32.f32 %v159
        %v162 = vcvt.s32.f32 %v160
        %vm163 = vcmask 130048
        %v165 = vsel %vm163, %v144, 0
        %v168 = vsel %vm163, %v146, 0
        %v171 = vsel %vm163, %v148, 0
        %v174 = vsel %vm163, %v150, 0
        %176 = vmatprep.subr.mxu0 0.0
        %177 = vmatpush1.msra.mxu0 %v161
        %178 = vmatprep.subr.mxu0 0.0
        %179 = vmatpush1.msra.mxu0 %v162
        %180 = vmatprep.subr.mxu0 0.0
        %181 = vmatpush1.msra.mxu0 0.0
        %182 = vmatprep.subr.mxu0 0.0
        %183 = vmatpush1.msra.mxu0 0.0
        %184 = vmatprep.subr.mxu0 0.0
        %185 = vmatpush1.msra.mxu0 0.0
        %186 = vmatprep.subr.mxu0 0.0
        %187 = vmatpush1.msra.mxu0 0.0
        %188 = vmatprep.subr.mxu0 0.0
        %189 = vmatpush1.msra.mxu0 0.0
        %190 = vmatprep.subr.mxu0 0.0
        %191 = vmatpush1.msra.mxu0 0.0
        %192 = vmatprep.subr.mxu0 0.0
        %193 = vmatpush1.msra.mxu0 0.0
        %194 = vmatprep.subr.mxu0 0.0
        %195 = vmatpush1.msra.mxu0 0.0
        %196 = vmatprep.subr.mxu0 0.0
        %197 = vmatpush1.msra.mxu0 0.0
        %198 = vmatprep.subr.mxu0 0.0
        %199 = vmatpush1.msra.mxu0 0.0
        %200 = vmatprep.subr.mxu0 0.0
        %201 = vmatpush1.msra.mxu0 0.0
        %202 = vmatprep.subr.mxu0 0.0
        %203 = vmatpush1.msra.mxu0 0.0
        %204 = vmatprep.subr.mxu0 0.0
        %205 = vmatpush1.msra.mxu0 0.0
        %206 = vmatprep.subr.mxu0 0.0
        %207 = vmatpush1.msra.mxu0 0.0
        %208 = vmatprep.subr.mxu0 0.0
        %209 = vmatpush1.msra.mxu0 0.0
        %210 = vmatprep.subr.mxu0 0.0
        %211 = vmatpush1.msra.mxu0 0.0
        %212 = vmatprep.subr.mxu0 0.0
        %213 = vmatpush1.msra.mxu0 0.0
        %214 = vmatprep.subr.mxu0 0.0
        %215 = vmatpush1.msra.mxu0 0.0
        %216 = vmatprep.subr.mxu0 0.0
        %217 = vmatpush1.msra.mxu0 0.0
        %218 = vmatprep.subr.mxu0 0.0
        %219 = vmatpush1.msra.mxu0 0.0
        %220 = vmatprep.subr.mxu0 0.0
        %221 = vmatpush1.msra.mxu0 0.0
        %222 = vmatprep.subr.mxu0 0.0
        %223 = vmatpush1.msra.mxu0 0.0
        %224 = vmatprep.subr.mxu0 0.0
        %225 = vmatpush1.msra.mxu0 0.0
        %226 = vmatprep.subr.mxu0 0.0
        %227 = vmatpush1.msra.mxu0 0.0
        %228 = vmatprep.subr.mxu0 0.0
        %229 = vmatpush1.msra.mxu0 0.0
        %230 = vmatprep.subr.mxu0 0.0
        %231 = vmatpush1.msra.mxu0 0.0
        %232 = vmatprep.subr.mxu0 0.0
        %233 = vmatpush1.msra.mxu0 0.0
        %234 = vmatprep.subr.mxu0 0.0
        %235 = vmatpush1.msra.mxu0 0.0
        %236 = vmatprep.subr.mxu0 0.0
        %237 = vmatpush1.msra.mxu0 0.0
        %238 = vmatprep.subr.mxu0 0.0
        %239 = vmatpush1.msra.mxu0 0.0
        %240 = vmatprep.mubr.f32.mxu0 0.0
        %241 = vmatmul.mubr.f32.gmra.mrb[0].mxu0 %v165
        %v242 = vpop.f32.mrb[0].mxu0
        %v243 = vadd.f32 0.0, %v242
        %v244 = vpop.f32.mrb[0].mxu0
        %245 = vmatprep.mubr.f32.mxu0 0.0
        %246 = vmatmul.mubr.f32.gmra.mrb[0].mxu0 %v168
        %v247 = vpop.f32.mrb[0].mxu0
        %v248 = vadd.f32 0.0, %v247
        %v249 = vpop.f32.mrb[0].mxu0
        %250 = vmatprep.mubr.f32.mxu0 0.0
        %251 = vmatmul.mubr.f32.gmra.mrb[0].mxu0 %v171
        %v252 = vpop.f32.mrb[0].mxu0
        %v253 = vadd.f32 0.0, %v252
        %v254 = vpop.f32.mrb[0].mxu0
        %255 = vmatprep.mubr.f32.mxu0 0.0
        %256 = vmatmul.mubr.f32.gmra.mrb[0].mxu0 %v174
        %v257 = vpop.f32.mrb[0].mxu0
        %v258 = vadd.f32 0.0, %v257
        %v259 = vpop.f32.mrb[0].mxu0
        %260 = vdwg.mxu0
        %s261 = scalar_lea.vmem %s134, 16 [#allocation5]
        %262 = vst.msk [vmem:[%s261] sm:$0xff] %vm135, %v243
        %263 = vst.msk [vmem:[%s261 + $0x8] sm:$0xff] %vm135, %v248
        %264 = vst.msk [vmem:[%s261 + $0x10] sm:$0xff] %vm135, %v253
        %265 = vst.msk [vmem:[%s261 + $0x18] sm:$0xff] %vm135, %v258
        %s266 = sand.u32 %s52, 1
        %s267 = scalar_lea.sflag [#allocation4], %s266
        %s268 = sand.u32 %s52, 1
        %s269 = smul.addr %s268, 64
        %s270 = scalar_lea.vmem [#allocation5], %s269
        // Predicated region
        $region29: #{tpu_custom_call.1} parent=23 // pred_check
          %p271 = pneg %p62
        $region30: #{tpu_custom_call.1} parent=23 // pred_check_branch
          %273 = sbr.rel (%p271) target = $region32
        $region31: #{tpu_custom_call.1} parent=23 // pred_region
          %s275 = ssub.s32 1024, 1024
          %276 = vsyncadd %s267, %s275
          %s277 = smul.addr %s18, 8
          %s278 = smul.addr %s277, 128
          %s279 = scalar_lea.hbm %s1, %s278
          %s280 = sshll.u32 %s270, 4
          %s281 = int_to_ptr.vmem [resolvable:$true] %s280
          %286 = dma.vmem_to_hbm [thread:$0]  %s281, 1024, %s279, %s267, 128, 128, 8
        $region32: #{tpu_custom_call.1} parent=23 // pred_fallthru
          _
      $region24: #{tpu_custom_call.1} parent=5 // pred_fallthru
        _
      %p287 = scmp.le.s32.totalorder 2, %s13
      // Predicated region
      $region33: #{tpu_custom_call.1} parent=5 // pred_check
        %p288 = pneg %p287
      $region34: #{tpu_custom_call.1} parent=5 // pred_check_branch
        %290 = sbr.rel (%p288) target = $region36
      $region35: #{tpu_custom_call.1} parent=5 // pred_region
        %s291 = ssub.s32 %s13, 2
        // Predicated region
        $region37: #{tpu_custom_call.1} parent=35 // pred_check
          %p292 = pneg %p68
        $region38: #{tpu_custom_call.1} parent=35 // pred_check_branch
          %294 = sbr.rel (%p292) target = $region40
        $region39: #{tpu_custom_call.1} parent=35 // pred_region
          %s295 = sand.u32 %s53, 1
          %s296 = scalar_lea.sflag [#allocation4], %s295
          %s297 = sand.u32 %s53, 1
          %s298 = smul.addr %s297, 64
          %s299 = scalar_lea.vmem [#allocation5], %s298
          %300 = dma.done %s296, 1024
        $region40: #{tpu_custom_call.1} parent=35 // pred_fallthru
          _
      $region36: #{tpu_custom_call.1} parent=5 // pred_fallthru
        _
    $region6: #{tpu_custom_call.1} parent=1 // loop_footer
      %s17 = sadd.s32 1, %s13
    $region7: #{tpu_custom_call.1} parent=1 // loop_footer_branch
      %12 = sbr.rel target = $region3
    $region8: #{tpu_custom_call.1} parent=1 // loop_exit
      _
    %301 = vsyncpa [#allocation3], 1
    %s302 = scalar_lea.sflag [#allocation3], 1
    %303 = vsyncpa %s302, 1
    %304 = vsyncpa [#allocation4], 1
    %s305 = scalar_lea.sflag [#allocation4], 1
    %306 = vsyncpa %s305, 1

</llo_original>
